<compile_context>
chip_gen: v5e
topology: v5e:2x2
jax: 0.10.0
libtpu: 0.0.40
codegen_flags: <defaults>
</compile_context>

<pallas_src>
import math
from functools import partial

import numpy as np
import jax
import jax.numpy as jnp
from jax import lax
from jax.experimental import pallas as pl
from jax.experimental.pallas import tpu as pltpu


def _round_up(x, n):
    return (x + n - 1) // n * n


# --------------------------------------------------------------------------- #
# Kernels
# --------------------------------------------------------------------------- #
def _cm_kernel_labels(f_ref, w_ref, rs_ref, rm_ref, cs_ref, lab_ref, out_ref, *, tn):
    """Training path: additive margin at the label column (labels < 0 ignored)."""
    j = pl.program_id(0)                                            # C-tile (slow axis)
    # Raw operands straight to the MXU, f32 accumulation.
    dot = jnp.dot(f_ref[...], w_ref[...], preferred_element_type=jnp.float32)
    # Hoisted normalization + magnitude scaling applied to the (tm, tn) result.
    scaled = dot * rs_ref[...] * cs_ref[...]
    labels = lab_ref[...]                                           # (tm, 1) int32
    col_ids = j * tn + lax.broadcasted_iota(jnp.int32, scaled.shape, 1)
    is_label = (col_ids == labels) & (labels >= 0)
    out_ref[...] = jnp.where(is_label, scaled - rm_ref[...], scaled).astype(out_ref.dtype)


def _cm_kernel_nolabels(f_ref, w_ref, rs_ref, cs_ref, out_ref):
    """Evaluation path: no margin, no mask, no label DMA."""
    dot = jnp.dot(f_ref[...], w_ref[...], preferred_element_type=jnp.float32)
    out_ref[...] = (dot * rs_ref[...] * cs_ref[...]).astype(out_ref.dtype)


# --------------------------------------------------------------------------- #
# Wrapper
# --------------------------------------------------------------------------- #
def cosine_margin_logits(features, w, labels=None, *, s=None, m=0.35,
                         tm=None, tn=None, out_dtype=jnp.float32,
                         vmem_budget=40 * 1024 * 1024):
    """features: (B, D); w: (D, C); labels: (B,) int (may contain negatives) or None.

    tm / tn (if given) act as tile-size caps; they are rounded to the hardware
    granularity and balanced against the padded problem size.
    """
    B, D = features.shape
    Dw, C = w.shape
    assert D == Dw
    eps = jnp.float32(1e-12)

    # ---- tiny XLA pre-pass: inverse row/column norms + per-row scale/margin ---
    f32 = features.astype(jnp.float32)
    w32 = w.astype(jnp.float32)
    f_norm = jnp.sqrt(jnp.sum(f32 * f32, axis=1, keepdims=True))            # (B, 1)
    inv_f = 1.0 / jnp.maximum(f_norm, eps)
    inv_w = 1.0 / jnp.maximum(
        jnp.sqrt(jnp.sum(w32 * w32, axis=0, keepdims=True)), eps)           # (1, C)

    if s is None:
        scale = f_norm                       # "no feature normalization" path
    else:
        scale = jnp.full((B, 1), jnp.float32(s))
    row_scale = (scale * inv_f).astype(jnp.float32)                         # (B, 1)
    row_margin = (scale * jnp.float32(m)).astype(jnp.float32)               # (B, 1)
    col_scale = inv_w.astype(jnp.float32)                                   # (1, C)

    labels_given = labels is not None
    if labels_given:
        labels_2d = labels.astype(jnp.int32).reshape(B, 1)

    # ---- VMEM-aware tile selection (double-buffered blocks under ~40 MiB) ----
    f_bytes = features.dtype.itemsize
    w_bytes = w.dtype.itemsize
    o_bytes = np.dtype(out_dtype).itemsize

    tm_cap = min(tm if tm is not None else 1024, max(16, _round_up(B, 16)))
    tn_cap = min(tn if tn is not None else 512, max(128, _round_up(C, 128)))
    tm_cap = _round_up(tm_cap, 16)
    tn_cap = _round_up(tn_cap, 128)

    n_small = 3 if labels_given else 2      # (tm,1) vectors, lane-padded to 128

    def _est(tm_, tn_):
        big = 2 * (tm_ * D * f_bytes + D * tn_ * w_bytes + tm_ * tn_ * o_bytes)
        small = 2 * (n_small * tm_ * 128 * 4 + tn_ * 4)
        return big + small

    while _est(tm_cap, tn_cap) > vmem_budget and tn_cap > 128:
        tn_cap = max(128, (tn_cap // 2) // 128 * 128)
    while _est(tm_cap, tn_cap) > vmem_budget and tm_cap > 16:
        tm_cap = max(16, (tm_cap // 2) // 16 * 16)

    # Balance tiles against the padded problem size (minimizes padding waste).
    B16 = _round_up(B, 16)
    C128 = _round_up(C, 128)
    nb = pl.cdiv(B16, tm_cap)
    tm = _round_up(pl.cdiv(B16, nb), 16)
    B_pad = nb * tm
    nc = pl.cdiv(C128, tn_cap)
    tn = _round_up(pl.cdiv(C128, nc), 128)
    C_pad = nc * tn

    # ---- pad to the tile grid (zeros; padded labels = -1 => no margin) -------
    pad_b = B_pad - B
    pad_c = C_pad - C
    if pad_b:
        features = jnp.pad(features, ((0, pad_b), (0, 0)))
        row_scale = jnp.pad(row_scale, ((0, pad_b), (0, 0)))
        row_margin = jnp.pad(row_margin, ((0, pad_b), (0, 0)))
        if labels_given:
            labels_2d = jnp.pad(labels_2d, ((0, pad_b), (0, 0)), constant_values=-1)
    if pad_c:
        w = jnp.pad(w, ((0, 0), (0, pad_c)))
        col_scale = jnp.pad(col_scale, ((0, 0), (0, pad_c)))

    # ---- grid: C-tiles outer (weights streamed once), B-tiles inner ----------
    grid = (C_pad // tn, B_pad // tm)

    f_spec = pl.BlockSpec((tm, D), lambda j, i: (i, 0))    # full feature rows
    w_spec = pl.BlockSpec((D, tn), lambda j, i: (0, j))    # full weight columns
    row_spec = pl.BlockSpec((tm, 1), lambda j, i: (i, 0))
    col_spec = pl.BlockSpec((1, tn), lambda j, i: (0, j))
    out_spec = pl.BlockSpec((tm, tn), lambda j, i: (i, j))

    bytes_accessed = (f_bytes * B_pad * D * (C_pad // tn)  # features, once per C-tile
                      + w_bytes * D * C_pad                # weights, once
                      + o_bytes * B_pad * C_pad            # output, once
                      + 4 * (n_small * B_pad + C_pad))     # small row/col vectors
    cost = pl.CostEstimate(flops=2 * B_pad * D * C_pad,
                           transcendentals=0,
                           bytes_accessed=int(bytes_accessed))

    cp = pltpu.CompilerParams(
        dimension_semantics=("parallel", "parallel"),
        vmem_limit_bytes=48 * 1024 * 1024)

    if labels_given:
        kernel = partial(_cm_kernel_labels, tn=tn)
        in_specs = [f_spec, w_spec, row_spec, row_spec, col_spec, row_spec]
        args = (features, w, row_scale, row_margin, col_scale, labels_2d)
    else:
        kernel = _cm_kernel_nolabels
        in_specs = [f_spec, w_spec, row_spec, col_spec]
        args = (features, w, row_scale, col_scale)

    out = pl.pallas_call(
        kernel,
        out_shape=jax.ShapeDtypeStruct((B_pad, C_pad), out_dtype),
        grid=grid,
        in_specs=in_specs,
        out_specs=out_spec,
        compiler_params=cp,
        cost_estimate=cost,
    )(*args)

    return out[:B, :C]


# --------------------------------------------------------------------------- #
# Pure-JAX reference mirroring the PyTorch forward
# --------------------------------------------------------------------------- #
def _reference_logits(features, w, labels, *, s=None, m=0.35):
    eps = 1e-12
    w_n = w / jnp.maximum(jnp.linalg.norm(w, axis=0, keepdims=True), eps)
    f_n = features / jnp.maximum(
        jnp.linalg.norm(features, axis=1, keepdims=True), eps)
    cos_theta = f_n @ w_n
    if labels is not None:
        kn = (labels >= 0)
        onehot = jax.nn.one_hot(jnp.where(kn, labels, 0), cos_theta.shape[1],
                                dtype=cos_theta.dtype)
        cos_theta = cos_theta - m * onehot * kn[:, None].astype(cos_theta.dtype)
    if s is None:
        a = jnp.linalg.norm(features, axis=1, keepdims=True)
        return a * cos_theta
    return s * cos_theta


# TODO(synk): the PyTorch module also renormalizes the `w` parameter in-place
# (a training-time side effect on the weights); this kernel returns logits only.

if __name__ == "__main__":
    M = 0.35
    key = jax.random.PRNGKey(0)

    # One lane/sublane-aligned config and one unaligned config (exercises padding).
    configs = [(8, 32, 256), (5, 32, 200)]

    for (B, IN_FEATURES, OUT_FEATURES) in configs:
        k_feat, k_w, k_lab, key = jax.random.split(key, 4)

        features = jax.random.normal(k_feat, (B, IN_FEATURES), dtype=jnp.float32)

        # nn.init.xavier_normal_ on (in_features, out_features)
        std = math.sqrt(2.0 / (IN_FEATURES + OUT_FEATURES))
        w = std * jax.random.normal(k_w, (IN_FEATURES, OUT_FEATURES),
                                    dtype=jnp.float32)

        labels = jax.random.randint(k_lab, (B,), 0, OUT_FEATURES, dtype=jnp.int32)
        labels = labels.at[1].set(-1)   # one "negative" (ignored) sample

        for s in (30.0, None):
            for lab in (labels, None):
                out = jax.block_until_ready(
                    cosine_margin_logits(features, w, lab, s=s, m=M))
                ref = _reference_logits(features, w, lab, s=s, m=M)
                assert out.shape == (B, OUT_FEATURES)
                assert jnp.allclose(out, ref, atol=2e-3, rtol=2e-3), \
                    (B, OUT_FEATURES, s, lab is None)

    print("KERNEL_OK")
</pallas_src>

<mosaic_0001>
module attributes {stable_mosaic.version = 11 : i64} {
  func.func @_cm_kernel_labels(%arg0: i32, %arg1: i32, %arg2: memref<16x32xf32, #tpu.memory_space<vmem>>, %arg3: memref<32x256xf32, #tpu.memory_space<vmem>>, %arg4: memref<16x1xf32, #tpu.memory_space<vmem>>, %arg5: memref<16x1xf32, #tpu.memory_space<vmem>>, %arg6: memref<1x256xf32, #tpu.memory_space<vmem>>, %arg7: memref<16x1xi32, #tpu.memory_space<vmem>>, %arg8: memref<16x256xf32, #tpu.memory_space<vmem>>) attributes {dimension_semantics = [#tpu.dimension_semantics<parallel>, #tpu.dimension_semantics<parallel>], iteration_bounds = array<i64: 1, 1>, scalar_prefetch = 0 : i64, scratch_operands = 0 : i64, tpu.core_type = #tpu.core_type<tc>, window_params = [{transform_indices = @transform_0, window_bounds = array<i64: 16, 32>}, {transform_indices = @transform_1, window_bounds = array<i64: 32, 256>}, {transform_indices = @transform_2, window_bounds = array<i64: 16, 1>}, {transform_indices = @transform_3, window_bounds = array<i64: 16, 1>}, {transform_indices = @transform_4, window_bounds = array<i64: 1, 256>}, {transform_indices = @transform_5, window_bounds = array<i64: 16, 1>}, {transform_indices = @transform_6, window_bounds = array<i64: 16, 256>}]} {
    %c0 = arith.constant 0 : index
    %c0_0 = arith.constant 0 : index
    %0 = vector.load %arg2[%c0, %c0_0] : memref<16x32xf32, #tpu.memory_space<vmem>>, vector<16x32xf32>
    %c0_1 = arith.constant 0 : index
    %c0_2 = arith.constant 0 : index
    %1 = vector.load %arg3[%c0_1, %c0_2] : memref<32x256xf32, #tpu.memory_space<vmem>>, vector<32x256xf32>
    %cst = arith.constant dense<0.000000e+00> : vector<16x256xf32>
    %2 = tpu.matmul %0, %1, %cst {dimension_numbers = #tpu.dot_dimension_numbers<[1], [0], [0], [1], [0, 0, 1, 1], [], []>} : vector<16x32xf32>, vector<32x256xf32>, vector<16x256xf32> -> vector<16x256xf32>
    %c0_3 = arith.constant 0 : index
    %c0_4 = arith.constant 0 : index
    %3 = vector.load %arg4[%c0_3, %c0_4] : memref<16x1xf32, #tpu.memory_space<vmem>>, vector<16x1xf32>
    %4 = vector.broadcast %3 : vector<16x1xf32> to vector<16x256xf32>
    %5 = arith.mulf %2, %4 : vector<16x256xf32>
    %c0_5 = arith.constant 0 : index
    %c0_6 = arith.constant 0 : index
    %6 = vector.load %arg6[%c0_5, %c0_6] : memref<1x256xf32, #tpu.memory_space<vmem>>, vector<1x256xf32>
    %7 = vector.broadcast %6 : vector<1x256xf32> to vector<16x256xf32>
    %8 = arith.mulf %5, %7 : vector<16x256xf32>
    %c0_7 = arith.constant 0 : index
    %c0_8 = arith.constant 0 : index
    %9 = vector.load %arg7[%c0_7, %c0_8] : memref<16x1xi32, #tpu.memory_space<vmem>>, vector<16x1xi32>
    %c256_i32 = arith.constant 256 : i32
    %10 = arith.muli %arg0, %c256_i32 : i32
    %11 = tpu.iota {dimensions = array<i32: 1>} : vector<16x256xi32>
    %12 = vector.broadcast %10 : i32 to vector<16x256xi32>
    %13 = arith.addi %12, %11 : vector<16x256xi32>
    %14 = vector.broadcast %9 : vector<16x1xi32> to vector<16x256xi32>
    %15 = arith.cmpi eq, %13, %14 : vector<16x256xi32>
    %c0_i32 = arith.constant 0 : i32
    %16 = vector.broadcast %c0_i32 : i32 to vector<16x1xi32>
    %17 = arith.cmpi sge, %9, %16 : vector<16x1xi32>
    %18 = vector.broadcast %17 : vector<16x1xi1> to vector<16x256xi1>
    %19 = arith.andi %15, %18 : vector<16x256xi1>
    %c0_9 = arith.constant 0 : index
    %c0_10 = arith.constant 0 : index
    %20 = vector.load %arg5[%c0_9, %c0_10] : memref<16x1xf32, #tpu.memory_space<vmem>>, vector<16x1xf32>
    %21 = vector.broadcast %20 : vector<16x1xf32> to vector<16x256xf32>
    %22 = arith.subf %8, %21 : vector<16x256xf32>
    %23 = arith.select %19, %22, %8 : vector<16x256xi1>, vector<16x256xf32>
    %c0_11 = arith.constant 0 : index
    %c0_12 = arith.constant 0 : index
    %24 = vector.load %arg8[%c0_11, %c0_12] : memref<16x256xf32, #tpu.memory_space<vmem>>, vector<16x256xf32>
    tpu.vector_store %arg8[%c0_11, %c0_12], %23 {strides = array<i32>} : memref<16x256xf32, #tpu.memory_space<vmem>>, vector<16x256xf32>,
    return
  }
  func.func @transform_0(%arg0: i32, %arg1: i32) -> (i32, i32) {
    %c0_i32 = arith.constant 0 : i32
    %c0_i32_0 = arith.constant 0 : i32
    return %arg1, %c0_i32 : i32, i32
  }
  func.func @transform_1(%arg0: i32, %arg1: i32) -> (i32, i32) {
    %c0_i32 = arith.constant 0 : i32
    %c0_i32_0 = arith.constant 0 : i32
    return %c0_i32, %arg0 : i32, i32
  }
  func.func @transform_2(%arg0: i32, %arg1: i32) -> (i32, i32) {
    %c0_i32 = arith.constant 0 : i32
    %c0_i32_0 = arith.constant 0 : i32
    return %arg1, %c0_i32 : i32, i32
  }
  func.func @transform_3(%arg0: i32, %arg1: i32) -> (i32, i32) {
    %c0_i32 = arith.constant 0 : i32
    %c0_i32_0 = arith.constant 0 : i32
    return %arg1, %c0_i32 : i32, i32
  }
  func.func @transform_4(%arg0: i32, %arg1: i32) -> (i32, i32) {
    %c0_i32 = arith.constant 0 : i32
    %c0_i32_0 = arith.constant 0 : i32
    return %c0_i32, %arg0 : i32, i32
  }
  func.func @transform_5(%arg0: i32, %arg1: i32) -> (i32, i32) {
    %c0_i32 = arith.constant 0 : i32
    %c0_i32_0 = arith.constant 0 : i32
    return %arg1, %c0_i32 : i32, i32
  }
  func.func @transform_6(%arg0: i32, %arg1: i32) -> (i32, i32) {
    %c0_i32 = arith.constant 0 : i32
    return %arg1, %arg0 : i32, i32
  }
}

</mosaic_0001>

<llo_original>
// kernel: tpu_custom_call.1
$region0: #{tpu_custom_call.1}
  #allocation0 [shape = 'u32[]', space=smem, size = 0x4, offset = 0x4, fixed_abs, tag = 'smem constant byte address 0x4 - core index']
  #allocation1 [shape = 'u32[72,128]{1,0:T(1,128)}', space=vmem, size = 0x9000, scoped, tag = 'internal scratch']
  %s0 = inlined_call_operand.vmem [shape: f32[16,32], index: 0, kind: input, shape index: {}]
  %s1 = inlined_call_operand.hbm [shape: f32[32,256], index: 1, kind: input, shape index: {}]
  %s2 = inlined_call_operand.vmem [shape: f32[16,1], index: 2, kind: input, shape index: {}]
  %s3 = inlined_call_operand.vmem [shape: f32[16,1], index: 3, kind: input, shape index: {}]
  %s4 = inlined_call_operand.vmem [shape: f32[1,256], index: 4, kind: input, shape index: {}]
  %s5 = inlined_call_operand.vmem [shape: s32[16,1], index: 5, kind: input, shape index: {}]
  %s6 = inlined_call_operand.hbm [shape: f32[16,256], index: 6, kind: output, shape index: {}]
  %s7 = sld [smem:[#allocation0]]
  $region38: #{tpu_custom_call.1} parent=0
    _
  %s9 = ssub.s32 1, %s7
  %s10 = scalar_select 0, %s9, %s7
  $region1: #{tpu_custom_call.1} parent=0
    #allocation2 [shape = 'u8[32768]{0}', space=vmem, size = 0x8000, scoped, tag = 'input window, operand 1, single buffered']
    #allocation3 [shape = 's32[1]{0}', space=sflag, size = 0x4, scoped, tag = 'scoped memory for tpu_custom_call.1']
    #allocation4 [shape = 's32[1]{0}', space=sflag, size = 0x4, scoped, tag = 'scoped memory for tpu_custom_call.1']
    #allocation5 [shape = 'u8[16384]{0}', space=vmem, size = 0x4000, scoped, tag = 'output window, operand 0, single buffered']
    %11 = vsyncpa [#allocation3], 0
    %12 = vsyncpa [#allocation4], 0
    // Predicated region
    $region2: #{tpu_custom_call.1} parent=1 // pred_check
      _
    $region3: #{tpu_custom_call.1} parent=1 // pred_check_branch
      %14 = sbr.rel (0) target = $region5
    $region4: #{tpu_custom_call.1} parent=1 // pred_region
      _
    $region5: #{tpu_custom_call.1} parent=1 // pred_fallthru
      _
    // Predicated region
    $region6: #{tpu_custom_call.1} parent=1 // pred_check
      _
    $region7: #{tpu_custom_call.1} parent=1 // pred_check_branch
      %16 = sbr.rel (0) target = $region9
    $region8: #{tpu_custom_call.1} parent=1 // pred_region
      %18 = vsyncadd [#allocation3], 0
      %s19 = sshll.u32 %s1, 4
      %s20 = int_to_ptr.hbm [resolvable:$true] %s19
      %s21 = sshll.u32 [#allocation2], 4
      %s22 = int_to_ptr.vmem [resolvable:$true] %s21
      %27 = dma.hbm_to_vmem [thread:$0]  %s20, 1024, %s22, [#allocation3], 256, 256, 16
    $region9: #{tpu_custom_call.1} parent=1 // pred_fallthru
      _
    // Predicated region
    $region10: #{tpu_custom_call.1} parent=1 // pred_check
      _
    $region11: #{tpu_custom_call.1} parent=1 // pred_check_branch
      %29 = sbr.rel (0) target = $region13
    $region12: #{tpu_custom_call.1} parent=1 // pred_region
      _
    $region13: #{tpu_custom_call.1} parent=1 // pred_fallthru
      _
    // Predicated region
    $region14: #{tpu_custom_call.1} parent=1 // pred_check
      _
    $region15: #{tpu_custom_call.1} parent=1 // pred_check_branch
      %31 = sbr.rel (0) target = $region17
    $region16: #{tpu_custom_call.1} parent=1 // pred_region
      _
    $region17: #{tpu_custom_call.1} parent=1 // pred_fallthru
      _
    // Predicated region
    $region18: #{tpu_custom_call.1} parent=1 // pred_check
      _
    $region19: #{tpu_custom_call.1} parent=1 // pred_check_branch
      %33 = sbr.rel (0) target = $region21
    $region20: #{tpu_custom_call.1} parent=1 // pred_region
      _
    $region21: #{tpu_custom_call.1} parent=1 // pred_fallthru
      _
    // Predicated region
    $region22: #{tpu_custom_call.1} parent=1 // pred_check
      _
    $region23: #{tpu_custom_call.1} parent=1 // pred_check_branch
      %35 = sbr.rel (0) target = $region25
    $region24: #{tpu_custom_call.1} parent=1 // pred_region
      _
    $region25: #{tpu_custom_call.1} parent=1 // pred_fallthru
      _
    // Predicated region
    $region26: #{tpu_custom_call.1} parent=1 // pred_check
      _
    $region27: #{tpu_custom_call.1} parent=1 // pred_check_branch
      %37 = sbr.rel (0) target = $region29
    $region28: #{tpu_custom_call.1} parent=1 // pred_region
      %39 = dma.done [#allocation3], 1024
    $region29: #{tpu_custom_call.1} parent=1 // pred_fallthru
      _
    %v40 = vld [vmem:[%s0] sm:$0xff]
    %v41 = vld [vmem:[%s0 + $0x8] sm:$0xff]
    %v42 = vld [vmem:[#allocation2] sm:$0xff]
    %v43 = vld [vmem:[#allocation2 + $0x8] sm:$0xff]
    %v44 = vld [vmem:[#allocation2 + $0x10] sm:$0xff]
    %v45 = vld [vmem:[#allocation2 + $0x18] sm:$0xff]
    %v46 = vld [vmem:[#allocation2 + $0x20] sm:$0xff]
    %v47 = vld [vmem:[#allocation2 + $0x28] sm:$0xff]
    %v48 = vld [vmem:[#allocation2 + $0x30] sm:$0xff]
    %v49 = vld [vmem:[#allocation2 + $0x38] sm:$0xff]
    %vm50 = vcmask 261120
    %v52 = vsel %vm50, %v40, 0
    %v55 = vsel %vm50, %v41, 0
    %57 = vmatpush.msra.mxu0 0.0
    %58 = vmatpush.msra.mxu0 0.0
    %59 = vmatpush.msra.mxu0 0.0
    %60 = vmatpush.msra.mxu0 0.0
    %61 = vmatpush.msra.mxu0 0.0
    %62 = vmatpush.msra.mxu0 0.0
    %63 = vmatpush.msra.mxu0 0.0
    %64 = vmatpush.msra.mxu0 0.0
    %65 = vmatpush.msra.mxu0 0.0
    %66 = vmatpush.msra.mxu0 0.0
    %67 = vmatpush.msra.mxu0 0.0
    %68 = vmatpush.msra.mxu0 0.0
    %69 = vmatpush.msra.mxu0 %v48
    %70 = vmatpush.msra.mxu0 %v46
    %71 = vmatpush.msra.mxu0 %v44
    %72 = vmatpush.msra.mxu0 %v42
    %73 = vmatmul.f32.gmra.mxu0 %v52
    %v74 = vpop.f32.mrf.mxu0
    %v75 = vadd.f32 0.0, %v74
    %76 = vmatmul.f32.gmra.mxu0 %v55
    %v77 = vpop.f32.mrf.mxu0
    %v78 = vadd.f32 0.0, %v77
    %79 = vdwg.mxu0
    %80 = vmatpush.msra.mxu0 0.0
    %81 = vmatpush.msra.mxu0 0.0
    %82 = vmatpush.msra.mxu0 0.0
    %83 = vmatpush.msra.mxu0 0.0
    %84 = vmatpush.msra.mxu0 0.0
    %85 = vmatpush.msra.mxu0 0.0
    %86 = vmatpush.msra.mxu0 0.0
    %87 = vmatpush.msra.mxu0 0.0
    %88 = vmatpush.msra.mxu0 0.0
    %89 = vmatpush.msra.mxu0 0.0
    %90 = vmatpush.msra.mxu0 0.0
    %91 = vmatpush.msra.mxu0 0.0
    %92 = vmatpush.msra.mxu0 %v49
    %93 = vmatpush.msra.mxu0 %v47
    %94 = vmatpush.msra.mxu0 %v45
    %95 = vmatpush.msra.mxu0 %v43
    %96 = vmatmul.f32.gmra.mxu0 %v52
    %v97 = vpop.f32.mrf.mxu0
    %v98 = vadd.f32 0.0, %v97
    %99 = vmatmul.f32.gmra.mxu0 %v55
    %v100 = vpop.f32.mrf.mxu0
    %v101 = vadd.f32 0.0, %v100
    %102 = vdwg.mxu0
    %v103 = vld [vmem:[%s2] sm:$0xff]
    %v104 = vld [vmem:[%s2 + $0x8] sm:$0xff]
    %106 = vset.pattern.permute.xlu0 0
    %107 = vperm.xlu0 %106, %v103
    %v108 = vpop.permute.xlu0 %107
    %111 = vset.pattern.permute.xlu0 0
    %112 = vperm.xlu0 %111, %v104
    %v113 = vpop.permute.xlu0 %112
    %v115 = vmul.f32 %v75, %v108
    %v116 = vmul.f32 %v98, %v108
    %v117 = vmul.f32 %v78, %v113
    %v118 = vmul.f32 %v101, %v113
    %v119 = vld [vmem:[%s4] sm:$0x3]
    %v121 = vperm.slane %v119, 0
    %v122 = vperm.slane %v119, 1
    %v125 = vmul.f32 %v115, %v121
    %v126 = vmul.f32 %v116, %v122
    %v127 = vmul.f32 %v117, %v121
    %v128 = vmul.f32 %v118, %v122
    %v129 = vld [vmem:[%s5] sm:$0xff]
    %v130 = vld [vmem:[%s5 + $0x8] sm:$0xff]
    %s131 = smul.u32 0, 256
    %v132 = vlaneseq
    %v133 = vand.u32 %v132, 127
    %v134 = vadd.s32 %v133, 128
    %v135 = vstv %s131
    %v136 = vadd.s32 %v135, %v133
    %v137 = vadd.s32 %v135, %v134
    %138 = vset.pattern.permute.xlu0 0
    %139 = vperm.xlu0 %138, %v129
    %v140 = vpop.permute.xlu0 %139
    %141 = vset.pattern.permute.xlu0 0
    %142 = vperm.xlu0 %141, %v130
    %v143 = vpop.permute.xlu0 %142
    %vm144 = vcmp.eq.s32.totalorder %v136, %v140
    %vm145 = vcmp.eq.s32.totalorder %v137, %v140
    %vm146 = vcmp.eq.s32.totalorder %v136, %v143
    %vm147 = vcmp.eq.s32.totalorder %v137, %v143
    %vm148 = vcmp.ge.s32.totalorder %v129, 0
    %vm149 = vcmp.ge.s32.totalorder %v130, 0
    %v150 = vsel %vm148, 1, 0
    %v151 = vsel %vm149, 1, 0
    %152 = vset.pattern.permute.xlu0 0
    %153 = vperm.xlu0 %152, %v150
    %v154 = vpop.permute.xlu0 %153
    %155 = vset.pattern.permute.xlu0 0
    %156 = vperm.xlu0 %155, %v151
    %v157 = vpop.permute.xlu0 %156
    %vm158 = vcmp.eq.s32.totalorder %v154, 1
    %vm159 = vcmp.eq.s32.totalorder %v157, 1
    %vm160 = vmand %vm144, %vm158
    %vm161 = vmand %vm145, %vm158
    %vm162 = vmand %vm146, %vm159
    %vm163 = vmand %vm147, %vm159
    %v164 = vld [vmem:[%s3] sm:$0xff]
    %v165 = vld [vmem:[%s3 + $0x8] sm:$0xff]
    %167 = vset.pattern.permute.xlu0 0
    %168 = vperm.xlu0 %167, %v164
    %v169 = vpop.permute.xlu0 %168
    %172 = vset.pattern.permute.xlu0 0
    %173 = vperm.xlu0 %172, %v165
    %v174 = vpop.permute.xlu0 %173
    %v176 = vsub.f32 %v125, %v169
    %v177 = vsub.f32 %v126, %v169
    %v178 = vsub.f32 %v127, %v174
    %v179 = vsub.f32 %v128, %v174
    %v180 = vsel %vm160, %v176, %v125
    %v181 = vsel %vm161, %v177, %v126
    %v182 = vsel %vm162, %v178, %v127
    %v183 = vsel %vm163, %v179, %v128
    %184 = vst [vmem:[#allocation5] sm:$0xff] %v180
    %185 = vst [vmem:[#allocation5 + $0x8] sm:$0xff] %v181
    %186 = vst [vmem:[#allocation5 + $0x10] sm:$0xff] %v182
    %187 = vst [vmem:[#allocation5 + $0x18] sm:$0xff] %v183
    // Predicated region
    $region30: #{tpu_custom_call.1} parent=1 // pred_check
      _
    $region31: #{tpu_custom_call.1} parent=1 // pred_check_branch
      %189 = sbr.rel (0) target = $region33
    $region32: #{tpu_custom_call.1} parent=1 // pred_region
      %191 = vsyncadd [#allocation4], 0
      %s192 = sshll.u32 [#allocation5], 4
      %s193 = int_to_ptr.vmem [resolvable:$true] %s192
      %s194 = sshll.u32 %s6, 4
      %s195 = int_to_ptr.hbm [resolvable:$true] %s194
      %200 = dma.vmem_to_hbm [thread:$0]  %s193, 512, %s195, [#allocation4], 256, 256, 16
    $region33: #{tpu_custom_call.1} parent=1 // pred_fallthru
      _
    // Predicated region
    $region34: #{tpu_custom_call.1} parent=1 // pred_check
      _
    $region35: #{tpu_custom_call.1} parent=1 // pred_check_branch
      %202 = sbr.rel (0) target = $region37
    $region36: #{tpu_custom_call.1} parent=1 // pred_region
      %204 = dma.done [#allocation4], 512
    $region37: #{tpu_custom_call.1} parent=1 // pred_fallthru
      _
    %205 = vsyncpa [#allocation3], 1
    %206 = vsyncpa [#allocation4], 1

</llo_original>
